<compile_context>
chip_gen: v7x
topology: tpu7x:2x2x1
jax: 0.10.0
libtpu: 0.0.40
codegen_flags: <defaults>
</compile_context>

<pallas_src>
import functools

import jax
import jax.numpy as jnp
from jax.experimental import pallas as pl
from jax.experimental.pallas import tpu as pltpu


def adapter_kernel(x_ref, w1_ref, b1_ref, w2_ref, b2_ref, w3_ref, b3_ref, o_ref):
    x = x_ref[...]                                        # (tb, D)

    h1 = jnp.dot(x, w1_ref[...], preferred_element_type=jnp.float32)
    h1 = jnp.maximum(h1 + b1_ref[...], 0.0)               # (tb, 64)

    h2 = jnp.dot(h1, w2_ref[...], preferred_element_type=jnp.float32)
    h2 = jnp.maximum(h2 + b2_ref[...], 0.0)               # (tb, 32)

    # fc3 (32 -> 1): contract the (1, 32) weight row against h2's feature axis
    # (transpose_rhs matmul).  This emits the result directly in a lane-dense
    # (1, tb) layout so the output store is a full-width vst, not a 1-lane
    # masked vst.msk column.
    yt = jax.lax.dot_general(
        w3_ref[...], h2,
        dimension_numbers=(((1,), (1,)), ((), ())),
        preferred_element_type=jnp.float32)               # (1, tb)
    o_ref[...] = (yt + b3_ref[...]).astype(o_ref.dtype)   # (1, tb)


def _fwd_vmem_bytes(block_b, d):
    # double-buffered x tile + double-buffered (1, block_b) out tile + params
    x_bytes = 2 * block_b * d * 4
    o_bytes = 2 * block_b * 4
    p_bytes = (d * 64 + 64 + 64 * 32 + 32 + 32 + 1) * 4
    return x_bytes + o_bytes + p_bytes


@functools.partial(jax.jit, static_argnames=("block_b",))
def adapter_forward(x, params, block_b=512):
    """x: (B, D) float32; params: (in,out) weights, (1,out) biases, w3 as (1,32)."""
    B, D = x.shape
    w1, b1 = params["w1"], params["b1"]   # (D, 64), (1, 64)
    w2, b2 = params["w2"], params["b2"]   # (64, 32), (1, 32)
    w3, b3 = params["w3"], params["b3"]   # (1, 32),  (1, 1)

    # Tile policy: block_b must be a multiple of 128 (it is the lane dim of the
    # output slab and the MXU M dim).  Clamp so the pipelined footprint stays
    # well under v7x's 64 MiB physical VMEM.
    assert block_b % 128 == 0, "block_b must be a multiple of 128"
    while block_b > 128 and _fwd_vmem_bytes(block_b, D) > 40 * 1024 * 1024:
        block_b //= 2

    grid_b = pl.cdiv(B, block_b)
    B_pad = grid_b * block_b
    if B_pad != B:
        # Padded rows are computed on zeros and sliced off below; they cannot
        # contaminate valid rows (no batch-wise reduction in this kernel).
        x = jnp.pad(x, ((0, B_pad - B), (0, 0)))

    # Constant index maps: the tiny weights/biases stay resident in VMEM across
    # all grid steps (Pallas skips the re-DMA when the block index is unchanged).
    full = lambda a: pl.BlockSpec(a.shape, lambda i: (0,) * a.ndim)

    flops = 2 * B_pad * (D * 64 + 64 * 32 + 32)
    bytes_accessed = (B_pad * D + B_pad + D * 64 + 64 + 64 * 32 + 32 + 32 + 1) * 4

    out = pl.pallas_call(
        adapter_kernel,
        out_shape=jax.ShapeDtypeStruct((1, B_pad), x.dtype),
        grid_spec=pltpu.PrefetchScalarGridSpec(
            num_scalar_prefetch=0,
            grid=(grid_b,),
            in_specs=[
                pl.BlockSpec((block_b, D), lambda i: (i, 0)),  # x batch tile
                full(w1), full(b1),
                full(w2), full(b2),
                full(w3), full(b3),
            ],
            out_specs=pl.BlockSpec((1, block_b), lambda i: (0, i)),
        ),
        compiler_params=pltpu.CompilerParams(
            dimension_semantics=("parallel",),
            vmem_limit_bytes=int(min(48 * 1024 * 1024,
                                     max(16 * 1024 * 1024,
                                         2 * _fwd_vmem_bytes(block_b, D)))),
        ),
        cost_estimate=pl.CostEstimate(
            flops=int(flops), transcendentals=0,
            bytes_accessed=int(bytes_accessed)),
    )(x, w1, b1, w2, b2, w3, b3)

    return out[0, :B].reshape(B, 1)


def init_adapter_params(key, input_number):
    """Deterministic init mimicking nn.Linear default U(-1/sqrt(fan_in), +...)."""
    def linear(k, fan_in, fan_out):
        kw, kb = jax.random.split(k)
        bound = 1.0 / jnp.sqrt(fan_in)
        w = jax.random.uniform(kw, (fan_in, fan_out), jnp.float32, -bound, bound)
        b = jax.random.uniform(kb, (1, fan_out), jnp.float32, -bound, bound)
        return w, b

    k1, k2, k3 = jax.random.split(key, 3)
    w1, b1 = linear(k1, input_number, 64)
    w2, b2 = linear(k2, 64, 32)
    w3, b3 = linear(k3, 32, 1)
    # fc3 weight stored as a (1, 32) row so the kernel contracts it against
    # h2's feature axis and writes a lane-dense (1, tb) result.
    return {"w1": w1, "b1": b1, "w2": w2, "b2": b2, "w3": w3.T, "b3": b3}


def adapter_reference(x, p):
    h1 = jnp.maximum(x @ p["w1"] + p["b1"], 0.0)
    h2 = jnp.maximum(h1 @ p["w2"] + p["b2"], 0.0)
    return h2 @ p["w3"].T + p["b3"]


if __name__ == "__main__":
    key = jax.random.PRNGKey(0)
    k_param, k_x = jax.random.split(key)

    batch = 256          # small, but gives a >=2-step grid so both v7x TCs run
    input_number = 32

    params = init_adapter_params(k_param, input_number)
    x = jax.random.normal(k_x, (batch, input_number), jnp.float32)
    ref = adapter_reference(x, params)

    # Multi-step grid (grid = 2 with block_b=128).
    out = jax.block_until_ready(adapter_forward(x, params, block_b=128))
    assert out.shape == (batch, 1), out.shape
    assert jnp.allclose(out, ref, atol=1e-5, rtol=1e-5), (
        f"max err {jnp.max(jnp.abs(out - ref))}")

    # Default tile (block_b=512) exercises the pad-and-slice path (B < block_b).
    out2 = jax.block_until_ready(adapter_forward(x, params))
    assert out2.shape == (batch, 1), out2.shape
    assert jnp.allclose(out2, ref, atol=1e-5, rtol=1e-5), (
        f"max err {jnp.max(jnp.abs(out2 - ref))}")

    print("KERNEL_OK")
</pallas_src>

<mosaic_0001>
module attributes {stable_mosaic.version = 11 : i64} {
  func.func @adapter_kernel(%arg0: i32, %arg1: memref<128x32xf32, #tpu.memory_space<vmem>>, %arg2: memref<32x64xf32, #tpu.memory_space<vmem>>, %arg3: memref<1x64xf32, #tpu.memory_space<vmem>>, %arg4: memref<64x32xf32, #tpu.memory_space<vmem>>, %arg5: memref<1x32xf32, #tpu.memory_space<vmem>>, %arg6: memref<1x32xf32, #tpu.memory_space<vmem>>, %arg7: memref<1x1xf32, #tpu.memory_space<vmem>>, %arg8: memref<1x128xf32, #tpu.memory_space<vmem>>) attributes {dimension_semantics = [#tpu.dimension_semantics<parallel>], iteration_bounds = array<i64: 2>, scalar_prefetch = 0 : i64, scratch_operands = 0 : i64, tpu.core_type = #tpu.core_type<tc>, window_params = [{transform_indices = @transform_0, window_bounds = array<i64: 128, 32>}, {pipeline_mode = #tpu.pipeline_mode<synchronous>, transform_indices = @transform_1, window_bounds = array<i64: 32, 64>}, {pipeline_mode = #tpu.pipeline_mode<synchronous>, transform_indices = @transform_2, window_bounds = array<i64: 1, 64>}, {pipeline_mode = #tpu.pipeline_mode<synchronous>, transform_indices = @transform_3, window_bounds = array<i64: 64, 32>}, {pipeline_mode = #tpu.pipeline_mode<synchronous>, transform_indices = @transform_4, window_bounds = array<i64: 1, 32>}, {pipeline_mode = #tpu.pipeline_mode<synchronous>, transform_indices = @transform_5, window_bounds = array<i64: 1, 32>}, {pipeline_mode = #tpu.pipeline_mode<synchronous>, transform_indices = @transform_6, window_bounds = array<i64: 1, 1>}, {transform_indices = @transform_7, window_bounds = array<i64: 1, 128>}]} {
    %c0 = arith.constant 0 : index
    %c0_0 = arith.constant 0 : index
    %0 = vector.load %arg1[%c0, %c0_0] : memref<128x32xf32, #tpu.memory_space<vmem>>, vector<128x32xf32>
    %c0_1 = arith.constant 0 : index
    %c0_2 = arith.constant 0 : index
    %1 = vector.load %arg2[%c0_1, %c0_2] : memref<32x64xf32, #tpu.memory_space<vmem>>, vector<32x64xf32>
    %cst = arith.constant dense<0.000000e+00> : vector<128x64xf32>
    %2 = tpu.matmul %0, %1, %cst {dimension_numbers = #tpu.dot_dimension_numbers<[1], [0], [0], [1], [0, 0, 1, 1], [], []>} : vector<128x32xf32>, vector<32x64xf32>, vector<128x64xf32> -> vector<128x64xf32>
    %c0_3 = arith.constant 0 : index
    %c0_4 = arith.constant 0 : index
    %3 = vector.load %arg3[%c0_3, %c0_4] : memref<1x64xf32, #tpu.memory_space<vmem>>, vector<1x64xf32>
    %4 = vector.broadcast %3 : vector<1x64xf32> to vector<128x64xf32>
    %5 = arith.addf %2, %4 : vector<128x64xf32>
    %cst_5 = arith.constant 0.000000e+00 : f32
    %6 = vector.broadcast %cst_5 : f32 to vector<128x64xf32>
    %7 = arith.maximumf %5, %6 : vector<128x64xf32>
    %c0_6 = arith.constant 0 : index
    %c0_7 = arith.constant 0 : index
    %8 = vector.load %arg4[%c0_6, %c0_7] : memref<64x32xf32, #tpu.memory_space<vmem>>, vector<64x32xf32>
    %cst_8 = arith.constant dense<0.000000e+00> : vector<128x32xf32>
    %9 = tpu.matmul %7, %8, %cst_8 {dimension_numbers = #tpu.dot_dimension_numbers<[1], [0], [0], [1], [0, 0, 1, 1], [], []>} : vector<128x64xf32>, vector<64x32xf32>, vector<128x32xf32> -> vector<128x32xf32>
    %c0_9 = arith.constant 0 : index
    %c0_10 = arith.constant 0 : index
    %10 = vector.load %arg5[%c0_9, %c0_10] : memref<1x32xf32, #tpu.memory_space<vmem>>, vector<1x32xf32>
    %11 = vector.broadcast %10 : vector<1x32xf32> to vector<128x32xf32>
    %12 = arith.addf %9, %11 : vector<128x32xf32>
    %cst_11 = arith.constant 0.000000e+00 : f32
    %13 = vector.broadcast %cst_11 : f32 to vector<128x32xf32>
    %14 = arith.maximumf %12, %13 : vector<128x32xf32>
    %c0_12 = arith.constant 0 : index
    %c0_13 = arith.constant 0 : index
    %15 = vector.load %arg6[%c0_12, %c0_13] : memref<1x32xf32, #tpu.memory_space<vmem>>, vector<1x32xf32>
    %cst_14 = arith.constant dense<0.000000e+00> : vector<1x128xf32>
    %16 = tpu.matmul %15, %14, %cst_14 {dimension_numbers = #tpu.dot_dimension_numbers<[1], [1], [0], [0], [0, 0, 1, 0], [], []>} : vector<1x32xf32>, vector<128x32xf32>, vector<1x128xf32> -> vector<1x128xf32>
    %c0_15 = arith.constant 0 : index
    %c0_16 = arith.constant 0 : index
    %17 = vector.load %arg7[%c0_15, %c0_16] : memref<1x1xf32, #tpu.memory_space<vmem>>, vector<1x1xf32>
    %18 = vector.broadcast %17 : vector<1x1xf32> to vector<1x128xf32>
    %19 = arith.addf %16, %18 : vector<1x128xf32>
    %c0_17 = arith.constant 0 : index
    %c0_18 = arith.constant 0 : index
    %20 = vector.load %arg8[%c0_17, %c0_18] : memref<1x128xf32, #tpu.memory_space<vmem>>, vector<1x128xf32>
    tpu.vector_store %arg8[%c0_17, %c0_18], %19 {strides = array<i32>} : memref<1x128xf32, #tpu.memory_space<vmem>>, vector<1x128xf32>,
    return
  }
  func.func @transform_0(%arg0: i32) -> (i32, i32) {
    %c0_i32 = arith.constant 0 : i32
    %c0_i32_0 = arith.constant 0 : i32
    return %arg0, %c0_i32 : i32, i32
  }
  func.func @transform_1(%arg0: i32) -> (i32, i32) {
    %c0_i32 = arith.constant 0 : i32
    %c0_i32_0 = arith.constant 0 : i32
    %c0_i32_1 = arith.constant 0 : i32
    return %c0_i32, %c0_i32_0 : i32, i32
  }
  func.func @transform_2(%arg0: i32) -> (i32, i32) {
    %c0_i32 = arith.constant 0 : i32
    %c0_i32_0 = arith.constant 0 : i32
    %c0_i32_1 = arith.constant 0 : i32
    return %c0_i32, %c0_i32_0 : i32, i32
  }
  func.func @transform_3(%arg0: i32) -> (i32, i32) {
    %c0_i32 = arith.constant 0 : i32
    %c0_i32_0 = arith.constant 0 : i32
    %c0_i32_1 = arith.constant 0 : i32
    return %c0_i32, %c0_i32_0 : i32, i32
  }
  func.func @transform_4(%arg0: i32) -> (i32, i32) {
    %c0_i32 = arith.constant 0 : i32
    %c0_i32_0 = arith.constant 0 : i32
    %c0_i32_1 = arith.constant 0 : i32
    return %c0_i32, %c0_i32_0 : i32, i32
  }
  func.func @transform_5(%arg0: i32) -> (i32, i32) {
    %c0_i32 = arith.constant 0 : i32
    %c0_i32_0 = arith.constant 0 : i32
    %c0_i32_1 = arith.constant 0 : i32
    return %c0_i32, %c0_i32_0 : i32, i32
  }
  func.func @transform_6(%arg0: i32) -> (i32, i32) {
    %c0_i32 = arith.constant 0 : i32
    %c0_i32_0 = arith.constant 0 : i32
    %c0_i32_1 = arith.constant 0 : i32
    return %c0_i32, %c0_i32_0 : i32, i32
  }
  func.func @transform_7(%arg0: i32) -> (i32, i32) {
    %c0_i32 = arith.constant 0 : i32
    %c0_i32_0 = arith.constant 0 : i32
    return %c0_i32, %arg0 : i32, i32
  }
}

</mosaic_0001>

<llo_original>
// kernel: adapter_forward.1
$region0: #{adapter_forward.1}
  #allocation0 [shape = 'u32[]', space=smem, size = 0x4, offset = 0x4, fixed_abs, tag = 'smem constant byte address 0x4 - core index']
  #allocation1 [shape = 'u32[144,128]{1,0:T(1,128)}', space=vmem, size = 0x12000, scoped, tag = 'internal scratch']
  #allocation2 [shape = 'f32[1,1]{1,0:T(1,128)S(1)}', space=vmem, size = 0x200, scoped, tag = 'scoped memory for adapter_forward.1']
  %s0 = inlined_call_operand.vmem [shape: f32[256,32], index: 0, kind: input, shape index: {}]
  %s1 = inlined_call_operand.vmem [shape: f32[32,64], index: 1, kind: input, shape index: {}]
  %s2 = inlined_call_operand.vmem [shape: f32[1,64], index: 2, kind: input, shape index: {}]
  %s3 = inlined_call_operand.vmem [shape: f32[64,32], index: 3, kind: input, shape index: {}]
  %s4 = inlined_call_operand.vmem [shape: f32[1,32], index: 4, kind: input, shape index: {}]
  %s5 = inlined_call_operand.vmem [shape: f32[1,32], index: 5, kind: input, shape index: {}]
  %s6 = inlined_call_operand.<no memory space> [shape: f32[1,1], index: 6, kind: input, shape index: {}]
  %s7 = inlined_call_operand.hbm [shape: f32[1,256], index: 7, kind: output, shape index: {}]
  %s8 = sld [smem:[#allocation0]]
  $region61: #{adapter_forward.1} parent=0
    _
  %s10 = ssub.s32 1, %s8
  %s11 = scalar_select 0, %s10, %s8
  %v12 = vstv %s6
  %13 = vst [vmem:[#allocation2] sm:$0x1] %v12
  $region1: #{adapter_forward.1} parent=0
    #allocation3 [shape = 'u8[1024]{0}', space=vmem, size = 0x400, scoped, tag = 'output window, operand 0']
    #allocation4 [shape = 's32[2]{0}', space=sflag, size = 0x8, scoped, tag = 'scoped memory for adapter_forward.1']
    %14 = vsyncpa [#allocation4], 0
    %s15 = scalar_lea.sflag [#allocation4], 1
    %16 = vsyncpa %s15, 0
    loop: start=0, step=1, limit=4
    $region2: #{adapter_forward.1} parent=1 // loop_pre_header
      _
    $region3: #{adapter_forward.1} parent=1 // loop_header
      %s18 = sphi 0, %s22
      %p19 = scmp.ge.s32.totalorder %s18, 4
      %s28 = sphi 0, %s30
      %s31 = sphi 0, %s28
      %s32 = sphi 0, %s31
      %s48 = sphi 0, %s32
      %s52 = sphi 0, %s52
      %s54 = sphi 0, %s52
      %s55 = sphi 0, %s54
      %s69 = sphi 0, %s55
      %s73 = sphi 0, %s73
      %s75 = sphi 0, %s73
      %s76 = sphi 0, %s75
      %s90 = sphi 0, %s76
      %s94 = sphi 0, %s94
      %s96 = sphi 0, %s94
      %s97 = sphi 0, %s96
      %s111 = sphi 0, %s97
      %s115 = sphi 0, %s115
      %s117 = sphi 0, %s115
      %s118 = sphi 0, %s117
      %s132 = sphi 0, %s118
      %s136 = sphi 0, %s136
      %s138 = sphi 0, %s136
      %s139 = sphi 0, %s138
      %s153 = sphi 0, %s139
      %s157 = sphi 0, %s157
      %s159 = sphi 0, %s157
      %s160 = sphi 0, %s159
      %s174 = sphi 0, %s160
      %s180 = sphi 0, %s182
      %s183 = sphi 0, %s180
      %s184 = sphi 0, %s183
      %s200 = sphi 0, %s184
    $region4: #{adapter_forward.1} parent=1 // loop_header_branch
      %21 = sbr.rel (%p19) target = $region8
    $region5: #{adapter_forward.1} parent=1 // loop_body
      %s23 = ssub.s32 %s18, 1
      %s24 = ssub.s32 %s18, 2
      %s25 = sadd.s32 %s18, 1
      %s26 = ssub.s32 %s18, %s25
      %p27 = scmp.eq.s32.totalorder %s26, 0
      %s29 = sadd.s32 %s28, 1
      %s30 = scalar_select %p27, %s28, %s29
      %p33 = pneg %p27
      %p34 = scmp.eq.s32.totalorder %s18, 1
      %p35 = por %p33, %p34
      %p36 = scmp.ne.s32.totalorder %s28, %s31
      %p37 = scmp.eq.s32.totalorder %s18, 0
      %p38 = por %p36, %p37
      %p39 = scmp.ne.s32.totalorder %s28, %s31
      %p40 = scmp.eq.s32.totalorder %s23, 1
      %p41 = por %p39, %p40
      %p42 = scmp.ne.s32.totalorder %s31, %s32
      %p43 = scmp.eq.s32.totalorder %s23, 0
      %p44 = por %p42, %p43
      %p45 = scmp.ne.s32.totalorder %s31, %s32
      %p46 = scmp.eq.s32.totalorder %s24, 1
      %p47 = por %p45, %p46
      %p49 = scmp.ne.s32.totalorder %s32, %s48
      %p50 = scmp.eq.s32.totalorder %s24, 0
      %p51 = por %p49, %p50
      %s53 = sadd.s32 %s52, 1
      %p56 = scmp.eq.s32.totalorder %s18, 1
      %p57 = scmp.ne.s32.totalorder %s52, %s54
      %p58 = scmp.eq.s32.totalorder %s18, 0
      %p59 = por %p57, %p58
      %p60 = scmp.ne.s32.totalorder %s52, %s54
      %p61 = scmp.eq.s32.totalorder %s23, 1
      %p62 = por %p60, %p61
      %p63 = scmp.ne.s32.totalorder %s54, %s55
      %p64 = scmp.eq.s32.totalorder %s23, 0
      %p65 = por %p63, %p64
      %p66 = scmp.ne.s32.totalorder %s54, %s55
      %p67 = scmp.eq.s32.totalorder %s24, 1
      %p68 = por %p66, %p67
      %p70 = scmp.ne.s32.totalorder %s55, %s69
      %p71 = scmp.eq.s32.totalorder %s24, 0
      %p72 = por %p70, %p71
      %s74 = sadd.s32 %s73, 1
      %p77 = scmp.eq.s32.totalorder %s18, 1
      %p78 = scmp.ne.s32.totalorder %s73, %s75
      %p79 = scmp.eq.s32.totalorder %s18, 0
      %p80 = por %p78, %p79
      %p81 = scmp.ne.s32.totalorder %s73, %s75
      %p82 = scmp.eq.s32.totalorder %s23, 1
      %p83 = por %p81, %p82
      %p84 = scmp.ne.s32.totalorder %s75, %s76
      %p85 = scmp.eq.s32.totalorder %s23, 0
      %p86 = por %p84, %p85
      %p87 = scmp.ne.s32.totalorder %s75, %s76
      %p88 = scmp.eq.s32.totalorder %s24, 1
      %p89 = por %p87, %p88
      %p91 = scmp.ne.s32.totalorder %s76, %s90
      %p92 = scmp.eq.s32.totalorder %s24, 0
      %p93 = por %p91, %p92
      %s95 = sadd.s32 %s94, 1
      %p98 = scmp.eq.s32.totalorder %s18, 1
      %p99 = scmp.ne.s32.totalorder %s94, %s96
      %p100 = scmp.eq.s32.totalorder %s18, 0
      %p101 = por %p99, %p100
      %p102 = scmp.ne.s32.totalorder %s94, %s96
      %p103 = scmp.eq.s32.totalorder %s23, 1
      %p104 = por %p102, %p103
      %p105 = scmp.ne.s32.totalorder %s96, %s97
      %p106 = scmp.eq.s32.totalorder %s23, 0
      %p107 = por %p105, %p106
      %p108 = scmp.ne.s32.totalorder %s96, %s97
      %p109 = scmp.eq.s32.totalorder %s24, 1
      %p110 = por %p108, %p109
      %p112 = scmp.ne.s32.totalorder %s97, %s111
      %p113 = scmp.eq.s32.totalorder %s24, 0
      %p114 = por %p112, %p113
      %s116 = sadd.s32 %s115, 1
      %p119 = scmp.eq.s32.totalorder %s18, 1
      %p120 = scmp.ne.s32.totalorder %s115, %s117
      %p121 = scmp.eq.s32.totalorder %s18, 0
      %p122 = por %p120, %p121
      %p123 = scmp.ne.s32.totalorder %s115, %s117
      %p124 = scmp.eq.s32.totalorder %s23, 1
      %p125 = por %p123, %p124
      %p126 = scmp.ne.s32.totalorder %s117, %s118
      %p127 = scmp.eq.s32.totalorder %s23, 0
      %p128 = por %p126, %p127
      %p129 = scmp.ne.s32.totalorder %s117, %s118
      %p130 = scmp.eq.s32.totalorder %s24, 1
      %p131 = por %p129, %p130
      %p133 = scmp.ne.s32.totalorder %s118, %s132
      %p134 = scmp.eq.s32.totalorder %s24, 0
      %p135 = por %p133, %p134
      %s137 = sadd.s32 %s136, 1
      %p140 = scmp.eq.s32.totalorder %s18, 1
      %p141 = scmp.ne.s32.totalorder %s136, %s138
      %p142 = scmp.eq.s32.totalorder %s18, 0
      %p143 = por %p141, %p142
      %p144 = scmp.ne.s32.totalorder %s136, %s138
      %p145 = scmp.eq.s32.totalorder %s23, 1
      %p146 = por %p144, %p145
      %p147 = scmp.ne.s32.totalorder %s138, %s139
      %p148 = scmp.eq.s32.totalorder %s23, 0
      %p149 = por %p147, %p148
      %p150 = scmp.ne.s32.totalorder %s138, %s139
      %p151 = scmp.eq.s32.totalorder %s24, 1
      %p152 = por %p150, %p151
      %p154 = scmp.ne.s32.totalorder %s139, %s153
      %p155 = scmp.eq.s32.totalorder %s24, 0
      %p156 = por %p154, %p155
      %s158 = sadd.s32 %s157, 1
      %p161 = scmp.eq.s32.totalorder %s18, 1
      %p162 = scmp.ne.s32.totalorder %s157, %s159
      %p163 = scmp.eq.s32.totalorder %s18, 0
      %p164 = por %p162, %p163
      %p165 = scmp.ne.s32.totalorder %s157, %s159
      %p166 = scmp.eq.s32.totalorder %s23, 1
      %p167 = por %p165, %p166
      %p168 = scmp.ne.s32.totalorder %s159, %s160
      %p169 = scmp.eq.s32.totalorder %s23, 0
      %p170 = por %p168, %p169
      %p171 = scmp.ne.s32.totalorder %s159, %s160
      %p172 = scmp.eq.s32.totalorder %s24, 1
      %p173 = por %p171, %p172
      %p175 = scmp.ne.s32.totalorder %s160, %s174
      %p176 = scmp.eq.s32.totalorder %s24, 0
      %p177 = por %p175, %p176
      %s178 = ssub.s32 %s18, %s25
      %p179 = scmp.eq.s32.totalorder %s178, 0
      %s181 = sadd.s32 %s180, 1
      %s182 = scalar_select %p179, %s180, %s181
      %p185 = pneg %p179
      %p186 = scmp.eq.s32.totalorder %s18, 1
      %p187 = por %p185, %p186
      %p188 = scmp.ne.s32.totalorder %s180, %s183
      %p189 = scmp.eq.s32.totalorder %s18, 0
      %p190 = por %p188, %p189
      %p191 = scmp.ne.s32.totalorder %s180, %s183
      %p192 = scmp.eq.s32.totalorder %s23, 1
      %p193 = por %p191, %p192
      %p194 = scmp.ne.s32.totalorder %s183, %s184
      %p195 = scmp.eq.s32.totalorder %s23, 0
      %p196 = por %p194, %p195
      %p197 = scmp.ne.s32.totalorder %s183, %s184
      %p198 = scmp.eq.s32.totalorder %s24, 1
      %p199 = por %p197, %p198
      %p201 = scmp.ne.s32.totalorder %s184, %s200
      %p202 = scmp.eq.s32.totalorder %s24, 0
      %p203 = por %p201, %p202
      %p204 = scmp.le.s32.totalorder 1, %s18
      %p205 = scmp.lt.s32.totalorder %s18, 3
      %p206 = pnand %p204, %p205
      %p207 = pneg %p206
      // Predicated region
      $region9: #{adapter_forward.1} parent=5 // pred_check
        _
      $region10: #{adapter_forward.1} parent=5 // pred_check_branch
        %209 = sbr.rel (%p206) target = $region12
      $region11: #{adapter_forward.1} parent=5 // pred_region
        %s210 = ssub.s32 %s18, 1
        // Predicated region
        $region13: #{adapter_forward.1} parent=11 // pred_check
          %p211 = pneg %p65
        $region14: #{adapter_forward.1} parent=11 // pred_check_branch
          %213 = sbr.rel (%p211) target = $region16
        $region15: #{adapter_forward.1} parent=11 // pred_region
          _
        $region16: #{adapter_forward.1} parent=11 // pred_fallthru
          _
        // Predicated region
        $region17: #{adapter_forward.1} parent=11 // pred_check
          %p214 = pneg %p86
        $region18: #{adapter_forward.1} parent=11 // pred_check_branch
          %216 = sbr.rel (%p214) target = $region20
        $region19: #{adapter_forward.1} parent=11 // pred_region
          _
        $region20: #{adapter_forward.1} parent=11 // pred_fallthru
          _
        // Predicated region
        $region21: #{adapter_forward.1} parent=11 // pred_check
          %p217 = pneg %p107
        $region22: #{adapter_forward.1} parent=11 // pred_check_branch
          %219 = sbr.rel (%p217) target = $region24
        $region23: #{adapter_forward.1} parent=11 // pred_region
          _
        $region24: #{adapter_forward.1} parent=11 // pred_fallthru
          _
        // Predicated region
        $region25: #{adapter_forward.1} parent=11 // pred_check
          %p220 = pneg %p128
        $region26: #{adapter_forward.1} parent=11 // pred_check_branch
          %222 = sbr.rel (%p220) target = $region28
        $region27: #{adapter_forward.1} parent=11 // pred_region
          _
        $region28: #{adapter_forward.1} parent=11 // pred_fallthru
          _
        // Predicated region
        $region29: #{adapter_forward.1} parent=11 // pred_check
          %p223 = pneg %p149
        $region30: #{adapter_forward.1} parent=11 // pred_check_branch
          %225 = sbr.rel (%p223) target = $region32
        $region31: #{adapter_forward.1} parent=11 // pred_region
          _
        $region32: #{adapter_forward.1} parent=11 // pred_fallthru
          _
        // Predicated region
        $region33: #{adapter_forward.1} parent=11 // pred_check
          %p226 = pneg %p170
        $region34: #{adapter_forward.1} parent=11 // pred_check_branch
          %228 = sbr.rel (%p226) target = $region36
        $region35: #{adapter_forward.1} parent=11 // pred_region
          _
        $region36: #{adapter_forward.1} parent=11 // pred_fallthru
          _
      $region12: #{adapter_forward.1} parent=5 // pred_fallthru
        _
      %p229 = scmp.lt.s32.totalorder %s18, 2
      // Predicated region
      $region37: #{adapter_forward.1} parent=5 // pred_check
        %p230 = pneg %p229
      $region38: #{adapter_forward.1} parent=5 // pred_check_branch
        %232 = sbr.rel (%p230) target = $region40
      $region39: #{adapter_forward.1} parent=5 // pred_region
        // Predicated region
        $region41: #{adapter_forward.1} parent=39 // pred_check
          %p233 = pneg %p38
        $region42: #{adapter_forward.1} parent=39 // pred_check_branch
          %235 = sbr.rel (%p233) target = $region44
        $region43: #{adapter_forward.1} parent=39 // pred_region
          %s236 = smul.u32 16, %s18
          %p237 = scmp.lt.s32.totalorder %s236, 31
          %s238 = scalar_select %p237, %s236, 31
          %s239 = smul.addr %s238, 8
          %s240 = scalar_lea.vmem %s0, %s239
          %s241 = smul.u32 16, %s18
        $region44: #{adapter_forward.1} parent=39 // pred_fallthru
          _
      $region40: #{adapter_forward.1} parent=5 // pred_fallthru
        _
      %p242 = scmp.le.s32.totalorder 1, %s18
      %p243 = scmp.lt.s32.totalorder %s18, 3
      %p244 = pnand %p242, %p243
      %p245 = pneg %p244
      // Predicated region
      $region45: #{adapter_forward.1} parent=5 // pred_check
        _
      $region46: #{adapter_forward.1} parent=5 // pred_check_branch
        %247 = sbr.rel (%p244) target = $region48
      $region47: #{adapter_forward.1} parent=5 // pred_region
        %s248 = ssub.s32 %s18, 1
        %s249 = smul.u32 16, %s23
        %p250 = scmp.lt.s32.totalorder %s249, 31
        %s251 = scalar_select %p250, %s249, 31
        %s252 = smul.addr %s251, 8
        %s253 = scalar_lea.vmem %s0, %s252
        %p254 = pneg %p44
        %p255 = pneg %p41
        %p256 = pneg %p65
        %p257 = pneg %p62
        %p258 = pneg %p86
        %p259 = pneg %p83
        %p260 = pneg %p107
        %p261 = pneg %p104
        %p262 = pneg %p128
        %p263 = pneg %p125
        %p264 = pneg %p149
        %p265 = pneg %p146
        %p266 = pneg %p170
        %p267 = pneg %p167
        %p268 = pneg %p196
        %p269 = pneg %p193
        %s270 = sand.u32 %s183, 1
        %s271 = scalar_lea.sflag [#allocation4], %s270
        %s272 = sand.u32 %s183, 1
        %s273 = scalar_lea.vmem [#allocation3], %s272
        %s274 = smul.u32 16, %s23
        %p275 = scmp.lt.s32.totalorder %s274, 31
        %s276 = scalar_select %p275, %s274, 31
        %s277 = smul.addr %s276, 8
        %s278 = scalar_lea.vmem %s0, %s277
        %s279 = smul.u32 16, %s23
        %v280 = vld [vmem:[%s278] sm:$0xff]
        %v281 = vld [vmem:[%s278 + $0x8] sm:$0xff]
        %v282 = vld [vmem:[%s278 + $0x10] sm:$0xff]
        %v283 = vld [vmem:[%s278 + $0x18] sm:$0xff]
        %v284 = vld [vmem:[%s278 + $0x20] sm:$0xff]
        %v285 = vld [vmem:[%s278 + $0x28] sm:$0xff]
        %v286 = vld [vmem:[%s278 + $0x30] sm:$0xff]
        %v287 = vld [vmem:[%s278 + $0x38] sm:$0xff]
        %v288 = vld [vmem:[%s278 + $0x40] sm:$0xff]
        %v289 = vld [vmem:[%s278 + $0x48] sm:$0xff]
        %v290 = vld [vmem:[%s278 + $0x50] sm:$0xff]
        %v291 = vld [vmem:[%s278 + $0x58] sm:$0xff]
        %v292 = vld [vmem:[%s278 + $0x60] sm:$0xff]
        %v293 = vld [vmem:[%s278 + $0x68] sm:$0xff]
        %v294 = vld [vmem:[%s278 + $0x70] sm:$0xff]
        %v295 = vld [vmem:[%s278 + $0x78] sm:$0xff]
        %v296 = vld [vmem:[%s1] sm:$0xff]
        %v297 = vld [vmem:[%s1 + $0x8] sm:$0xff]
        %v298 = vld [vmem:[%s1 + $0x10] sm:$0xff]
        %v299 = vld [vmem:[%s1 + $0x18] sm:$0xff]
        %v300 = vld [vmem:[%s2] sm:$0x1]
        %v302 = vlaneseq
        %v303 = vshrl.u32 %v302, 7
        %v304 = vsub.s32 0, %v303
        %v305 = vrot.slane %v300, %v304
        %vm307 = vcmask 261120
        %v309 = vsel %vm307, %v280, 0
        %v312 = vsel %vm307, %v281, 0
        %v315 = vsel %vm307, %v282, 0
        %v318 = vsel %vm307, %v283, 0
        %v321 = vsel %vm307, %v284, 0
        %v324 = vsel %vm307, %v285, 0
        %v327 = vsel %vm307, %v286, 0
        %v330 = vsel %vm307, %v287, 0
        %v333 = vsel %vm307, %v288, 0
        %v336 = vsel %vm307, %v289, 0
        %v339 = vsel %vm307, %v290, 0
        %v342 = vsel %vm307, %v291, 0
        %v345 = vsel %vm307, %v292, 0
        %v348 = vsel %vm307, %v293, 0
        %v351 = vsel %vm307, %v294, 0
        %v354 = vsel %vm307, %v295, 0
        %356 = vmatprep.subr.mxu0 0.0
        %357 = vmatpush1.msra.mxu0 %v296
        %358 = vmatprep.subr.mxu0 0.0
        %359 = vmatpush1.msra.mxu0 %v297
        %360 = vmatprep.subr.mxu0 0.0
        %361 = vmatpush1.msra.mxu0 %v298
        %362 = vmatprep.subr.mxu0 0.0
        %363 = vmatpush1.msra.mxu0 %v299
        %364 = vmatprep.subr.mxu0 0.0
        %365 = vmatpush1.msra.mxu0 0.0
        %366 = vmatprep.subr.mxu0 0.0
        %367 = vmatpush1.msra.mxu0 0.0
        %368 = vmatprep.subr.mxu0 0.0
        %369 = vmatpush1.msra.mxu0 0.0
        %370 = vmatprep.subr.mxu0 0.0
        %371 = vmatpush1.msra.mxu0 0.0
        %372 = vmatprep.subr.mxu0 0.0
        %373 = vmatpush1.msra.mxu0 0.0
        %374 = vmatprep.subr.mxu0 0.0
        %375 = vmatpush1.msra.mxu0 0.0
        %376 = vmatprep.subr.mxu0 0.0
        %377 = vmatpush1.msra.mxu0 0.0
        %378 = vmatprep.subr.mxu0 0.0
        %379 = vmatpush1.msra.mxu0 0.0
        %380 = vmatprep.subr.mxu0 0.0
        %381 = vmatpush1.msra.mxu0 0.0
        %382 = vmatprep.subr.mxu0 0.0
        %383 = vmatpush1.msra.mxu0 0.0
        %384 = vmatprep.subr.mxu0 0.0
        %385 = vmatpush1.msra.mxu0 0.0
        %386 = vmatprep.subr.mxu0 0.0
        %387 = vmatpush1.msra.mxu0 0.0
        %388 = vmatprep.subr.mxu0 0.0
        %389 = vmatpush1.msra.mxu0 0.0
        %390 = vmatprep.subr.mxu0 0.0
        %391 = vmatpush1.msra.mxu0 0.0
        %392 = vmatprep.subr.mxu0 0.0
        %393 = vmatpush1.msra.mxu0 0.0
        %394 = vmatprep.subr.mxu0 0.0
        %395 = vmatpush1.msra.mxu0 0.0
        %396 = vmatprep.subr.mxu0 0.0
        %397 = vmatpush1.msra.mxu0 0.0
        %398 = vmatprep.subr.mxu0 0.0
        %399 = vmatpush1.msra.mxu0 0.0
        %400 = vmatprep.subr.mxu0 0.0
        %401 = vmatpush1.msra.mxu0 0.0
        %402 = vmatprep.subr.mxu0 0.0
        %403 = vmatpush1.msra.mxu0 0.0
        %404 = vmatprep.subr.mxu0 0.0
        %405 = vmatpush1.msra.mxu0 0.0
        %406 = vmatprep.subr.mxu0 0.0
        %407 = vmatpush1.msra.mxu0 0.0
        %408 = vmatprep.subr.mxu0 0.0
        %409 = vmatpush1.msra.mxu0 0.0
        %410 = vmatprep.subr.mxu0 0.0
        %411 = vmatpush1.msra.mxu0 0.0
        %412 = vmatprep.subr.mxu0 0.0
        %413 = vmatpush1.msra.mxu0 0.0
        %414 = vmatprep.subr.mxu0 0.0
        %415 = vmatpush1.msra.mxu0 0.0
        %416 = vmatprep.subr.mxu0 0.0
        %417 = vmatpush1.msra.mxu0 0.0
        %418 = vmatprep.subr.mxu0 0.0
        %419 = vmatpush1.msra.mxu0 0.0
        %420 = vmatprep.mubr.f32.mxu0 0.0
        %421 = vmatmul.mubr.f32.gmra.mrb[0].mxu0 %v309
        %v422 = vpop.f32.mrb[0].mxu0
        %v423 = vadd.f32 %v305, %v422
        %v424 = vpop.f32.mrb[0].mxu0
        %425 = vmatprep.mubr.f32.mxu0 0.0
        %426 = vmatmul.mubr.f32.gmra.mrb[0].mxu0 %v312
        %v427 = vpop.f32.mrb[0].mxu0
        %v428 = vadd.f32 %v305, %v427
        %v429 = vpop.f32.mrb[0].mxu0
        %430 = vmatprep.mubr.f32.mxu0 0.0
        %431 = vmatmul.mubr.f32.gmra.mrb[0].mxu0 %v315
        %v432 = vpop.f32.mrb[0].mxu0
        %v433 = vadd.f32 %v305, %v432
        %v434 = vpop.f32.mrb[0].mxu0
        %435 = vmatprep.mubr.f32.mxu0 0.0
        %436 = vmatmul.mubr.f32.gmra.mrb[0].mxu0 %v318
        %v437 = vpop.f32.mrb[0].mxu0
        %v438 = vadd.f32 %v305, %v437
        %v439 = vpop.f32.mrb[0].mxu0
        %440 = vmatprep.mubr.f32.mxu0 0.0
        %441 = vmatmul.mubr.f32.gmra.mrb[0].mxu0 %v321
        %v442 = vpop.f32.mrb[0].mxu0
        %v443 = vadd.f32 %v305, %v442
        %v444 = vpop.f32.mrb[0].mxu0
        %445 = vmatprep.mubr.f32.mxu0 0.0
        %446 = vmatmul.mubr.f32.gmra.mrb[0].mxu0 %v324
        %v447 = vpop.f32.mrb[0].mxu0
        %v448 = vadd.f32 %v305, %v447
        %v449 = vpop.f32.mrb[0].mxu0
        %450 = vmatprep.mubr.f32.mxu0 0.0
        %451 = vmatmul.mubr.f32.gmra.mrb[0].mxu0 %v327
        %v452 = vpop.f32.mrb[0].mxu0
        %v453 = vadd.f32 %v305, %v452
        %v454 = vpop.f32.mrb[0].mxu0
        %455 = vmatprep.mubr.f32.mxu0 0.0
        %456 = vmatmul.mubr.f32.gmra.mrb[0].mxu0 %v330
        %v457 = vpop.f32.mrb[0].mxu0
        %v458 = vadd.f32 %v305, %v457
        %v459 = vpop.f32.mrb[0].mxu0
        %460 = vmatprep.mubr.f32.mxu0 0.0
        %461 = vmatmul.mubr.f32.gmra.mrb[0].mxu0 %v333
        %v462 = vpop.f32.mrb[0].mxu0
        %v463 = vadd.f32 %v305, %v462
        %v464 = vpop.f32.mrb[0].mxu0
        %465 = vmatprep.mubr.f32.mxu0 0.0
        %466 = vmatmul.mubr.f32.gmra.mrb[0].mxu0 %v336
        %v467 = vpop.f32.mrb[0].mxu0
        %v468 = vadd.f32 %v305, %v467
        %v469 = vpop.f32.mrb[0].mxu0
        %470 = vmatprep.mubr.f32.mxu0 0.0
        %471 = vmatmul.mubr.f32.gmra.mrb[0].mxu0 %v339
        %v472 = vpop.f32.mrb[0].mxu0
        %v473 = vadd.f32 %v305, %v472
        %v474 = vpop.f32.mrb[0].mxu0
        %475 = vmatprep.mubr.f32.mxu0 0.0
        %476 = vmatmul.mubr.f32.gmra.mrb[0].mxu0 %v342
        %v477 = vpop.f32.mrb[0].mxu0
        %v478 = vadd.f32 %v305, %v477
        %v479 = vpop.f32.mrb[0].mxu0
        %480 = vmatprep.mubr.f32.mxu0 0.0
        %481 = vmatmul.mubr.f32.gmra.mrb[0].mxu0 %v345
        %v482 = vpop.f32.mrb[0].mxu0
        %v483 = vadd.f32 %v305, %v482
        %v484 = vpop.f32.mrb[0].mxu0
        %485 = vmatprep.mubr.f32.mxu0 0.0
        %486 = vmatmul.mubr.f32.gmra.mrb[0].mxu0 %v348
        %v487 = vpop.f32.mrb[0].mxu0
        %v488 = vadd.f32 %v305, %v487
        %v489 = vpop.f32.mrb[0].mxu0
        %490 = vmatprep.mubr.f32.mxu0 0.0
        %491 = vmatmul.mubr.f32.gmra.mrb[0].mxu0 %v351
        %v492 = vpop.f32.mrb[0].mxu0
        %v493 = vadd.f32 %v305, %v492
        %v494 = vpop.f32.mrb[0].mxu0
        %495 = vmatprep.mubr.f32.mxu0 0.0
        %496 = vmatmul.mubr.f32.gmra.mrb[0].mxu0 %v354
        %v497 = vpop.f32.mrb[0].mxu0
        %v498 = vadd.f32 %v305, %v497
        %v499 = vpop.f32.mrb[0].mxu0
        %500 = vdwg.mxu0
        %v501 = vmax.f32 %v423, 0.0
        %v502 = vmax.f32 %v428, 0.0
        %v503 = vmax.f32 %v433, 0.0
        %v504 = vmax.f32 %v438, 0.0
        %v505 = vmax.f32 %v443, 0.0
        %v506 = vmax.f32 %v448, 0.0
        %v507 = vmax.f32 %v453, 0.0
        %v508 = vmax.f32 %v458, 0.0
        %v509 = vmax.f32 %v463, 0.0
        %v510 = vmax.f32 %v468, 0.0
        %v511 = vmax.f32 %v473, 0.0
        %v512 = vmax.f32 %v478, 0.0
        %v513 = vmax.f32 %v483, 0.0
        %v514 = vmax.f32 %v488, 0.0
        %v515 = vmax.f32 %v493, 0.0
        %v516 = vmax.f32 %v498, 0.0
        %v517 = vld [vmem:[%s3] sm:$0xff]
        %v518 = vld [vmem:[%s3 + $0x8] sm:$0xff]
        %v519 = vld [vmem:[%s3 + $0x10] sm:$0xff]
        %v520 = vld [vmem:[%s3 + $0x18] sm:$0xff]
        %v521 = vld [vmem:[%s3 + $0x20] sm:$0xff]
        %v522 = vld [vmem:[%s3 + $0x28] sm:$0xff]
        %v523 = vld [vmem:[%s3 + $0x30] sm:$0xff]
        %v524 = vld [vmem:[%s3 + $0x38] sm:$0xff]
        %v525 = vld [vmem:[%s4] sm:$0x1]
        %v527 = vlaneseq
        %v528 = vshrl.u32 %v527, 7
        %v529 = vsub.s32 0, %v528
        %v530 = vrot.slane %v525, %v529
        %vm532 = vcmask 523264
        %v534 = vsel %vm532, %v501, 0
        %v537 = vsel %vm532, %v502, 0
        %v540 = vsel %vm532, %v503, 0
        %v543 = vsel %vm532, %v504, 0
        %v546 = vsel %vm532, %v505, 0
        %v549 = vsel %vm532, %v506, 0
        %v552 = vsel %vm532, %v507, 0
        %v555 = vsel %vm532, %v508, 0
        %v558 = vsel %vm532, %v509, 0
        %v561 = vsel %vm532, %v510, 0
        %v564 = vsel %vm532, %v511, 0
        %v567 = vsel %vm532, %v512, 0
        %v570 = vsel %vm532, %v513, 0
        %v573 = vsel %vm532, %v514, 0
        %v576 = vsel %vm532, %v515, 0
        %v579 = vsel %vm532, %v516, 0
        %581 = vmatprep.subr.mxu0 0.0
        %582 = vmatpush1.msra.mxu0 %v517
        %583 = vmatprep.subr.mxu0 0.0
        %584 = vmatpush1.msra.mxu0 %v518
        %585 = vmatprep.subr.mxu0 0.0
        %586 = vmatpush1.msra.mxu0 %v519
        %587 = vmatprep.subr.mxu0 0.0
        %588 = vmatpush1.msra.mxu0 %v520
        %589 = vmatprep.subr.mxu0 0.0
        %590 = vmatpush1.msra.mxu0 %v521
        %591 = vmatprep.subr.mxu0 0.0
        %592 = vmatpush1.msra.mxu0 %v522
        %593 = vmatprep.subr.mxu0 0.0
        %594 = vmatpush1.msra.mxu0 %v523
        %595 = vmatprep.subr.mxu0 0.0
        %596 = vmatpush1.msra.mxu0 %v524
        %597 = vmatprep.subr.mxu0 0.0
        %598 = vmatpush1.msra.mxu0 0.0
        %599 = vmatprep.subr.mxu0 0.0
        %600 = vmatpush1.msra.mxu0 0.0
        %601 = vmatprep.subr.mxu0 0.0
        %602 = vmatpush1.msra.mxu0 0.0
        %603 = vmatprep.subr.mxu0 0.0
        %604 = vmatpush1.msra.mxu0 0.0
        %605 = vmatprep.subr.mxu0 0.0
        %606 = vmatpush1.msra.mxu0 0.0
        %607 = vmatprep.subr.mxu0 0.0
        %608 = vmatpush1.msra.mxu0 0.0
        %609 = vmatprep.subr.mxu0 0.0
        %610 = vmatpush1.msra.mxu0 0.0
        %611 = vmatprep.subr.mxu0 0.0
        %612 = vmatpush1.msra.mxu0 0.0
        %613 = vmatprep.subr.mxu0 0.0
        %614 = vmatpush1.msra.mxu0 0.0
        %615 = vmatprep.subr.mxu0 0.0
        %616 = vmatpush1.msra.mxu0 0.0
        %617 = vmatprep.subr.mxu0 0.0
        %618 = vmatpush1.msra.mxu0 0.0
        %619 = vmatprep.subr.mxu0 0.0
        %620 = vmatpush1.msra.mxu0 0.0
        %621 = vmatprep.subr.mxu0 0.0
        %622 = vmatpush1.msra.mxu0 0.0
        %623 = vmatprep.subr.mxu0 0.0
        %624 = vmatpush1.msra.mxu0 0.0
        %625 = vmatprep.subr.mxu0 0.0
        %626 = vmatpush1.msra.mxu0 0.0
        %627 = vmatprep.subr.mxu0 0.0
        %628 = vmatpush1.msra.mxu0 0.0
        %629 = vmatprep.subr.mxu0 0.0
        %630 = vmatpush1.msra.mxu0 0.0
        %631 = vmatprep.subr.mxu0 0.0
        %632 = vmatpush1.msra.mxu0 0.0
        %633 = vmatprep.subr.mxu0 0.0
        %634 = vmatpush1.msra.mxu0 0.0
        %635 = vmatprep.subr.mxu0 0.0
        %636 = vmatpush1.msra.mxu0 0.0
        %637 = vmatprep.subr.mxu0 0.0
        %638 = vmatpush1.msra.mxu0 0.0
        %639 = vmatprep.subr.mxu0 0.0
        %640 = vmatpush1.msra.mxu0 0.0
        %641 = vmatprep.subr.mxu0 0.0
        %642 = vmatpush1.msra.mxu0 0.0
        %643 = vmatprep.subr.mxu0 0.0
        %644 = vmatpush1.msra.mxu0 0.0
        %645 = vmatprep.mubr.f32.mxu0 0.0
        %646 = vmatmul.mubr.f32.gmra.mrb[0].mxu0 %v534
        %v647 = vpop.f32.mrb[0].mxu0
        %v648 = vadd.f32 %v530, %v647
        %v649 = vpop.f32.mrb[0].mxu0
        %650 = vmatprep.mubr.f32.mxu0 0.0
        %651 = vmatmul.mubr.f32.gmra.mrb[0].mxu0 %v537
        %v652 = vpop.f32.mrb[0].mxu0
        %v653 = vadd.f32 %v530, %v652
        %v654 = vpop.f32.mrb[0].mxu0
        %655 = vmatprep.mubr.f32.mxu0 0.0
        %656 = vmatmul.mubr.f32.gmra.mrb[0].mxu0 %v540
        %v657 = vpop.f32.mrb[0].mxu0
        %v658 = vadd.f32 %v530, %v657
        %v659 = vpop.f32.mrb[0].mxu0
        %660 = vmatprep.mubr.f32.mxu0 0.0
        %661 = vmatmul.mubr.f32.gmra.mrb[0].mxu0 %v543
        %v662 = vpop.f32.mrb[0].mxu0
        %v663 = vadd.f32 %v530, %v662
        %v664 = vpop.f32.mrb[0].mxu0
        %665 = vmatprep.mubr.f32.mxu0 0.0
        %666 = vmatmul.mubr.f32.gmra.mrb[0].mxu0 %v546
        %v667 = vpop.f32.mrb[0].mxu0
        %v668 = vadd.f32 %v530, %v667
        %v669 = vpop.f32.mrb[0].mxu0
        %670 = vmatprep.mubr.f32.mxu0 0.0
        %671 = vmatmul.mubr.f32.gmra.mrb[0].mxu0 %v549
        %v672 = vpop.f32.mrb[0].mxu0
        %v673 = vadd.f32 %v530, %v672
        %v674 = vpop.f32.mrb[0].mxu0
        %675 = vmatprep.mubr.f32.mxu0 0.0
        %676 = vmatmul.mubr.f32.gmra.mrb[0].mxu0 %v552
        %v677 = vpop.f32.mrb[0].mxu0
        %v678 = vadd.f32 %v530, %v677
        %v679 = vpop.f32.mrb[0].mxu0
        %680 = vmatprep.mubr.f32.mxu0 0.0
        %681 = vmatmul.mubr.f32.gmra.mrb[0].mxu0 %v555
        %v682 = vpop.f32.mrb[0].mxu0
        %v683 = vadd.f32 %v530, %v682
        %v684 = vpop.f32.mrb[0].mxu0
        %685 = vmatprep.mubr.f32.mxu0 0.0
        %686 = vmatmul.mubr.f32.gmra.mrb[0].mxu0 %v558
        %v687 = vpop.f32.mrb[0].mxu0
        %v688 = vadd.f32 %v530, %v687
        %v689 = vpop.f32.mrb[0].mxu0
        %690 = vmatprep.mubr.f32.mxu0 0.0
        %691 = vmatmul.mubr.f32.gmra.mrb[0].mxu0 %v561
        %v692 = vpop.f32.mrb[0].mxu0
        %v693 = vadd.f32 %v530, %v692
        %v694 = vpop.f32.mrb[0].mxu0
        %695 = vmatprep.mubr.f32.mxu0 0.0
        %696 = vmatmul.mubr.f32.gmra.mrb[0].mxu0 %v564
        %v697 = vpop.f32.mrb[0].mxu0
        %v698 = vadd.f32 %v530, %v697
        %v699 = vpop.f32.mrb[0].mxu0
        %700 = vmatprep.mubr.f32.mxu0 0.0
        %701 = vmatmul.mubr.f32.gmra.mrb[0].mxu0 %v567
        %v702 = vpop.f32.mrb[0].mxu0
        %v703 = vadd.f32 %v530, %v702
        %v704 = vpop.f32.mrb[0].mxu0
        %705 = vmatprep.mubr.f32.mxu0 0.0
        %706 = vmatmul.mubr.f32.gmra.mrb[0].mxu0 %v570
        %v707 = vpop.f32.mrb[0].mxu0
        %v708 = vadd.f32 %v530, %v707
        %v709 = vpop.f32.mrb[0].mxu0
        %710 = vmatprep.mubr.f32.mxu0 0.0
        %711 = vmatmul.mubr.f32.gmra.mrb[0].mxu0 %v573
        %v712 = vpop.f32.mrb[0].mxu0
        %v713 = vadd.f32 %v530, %v712
        %v714 = vpop.f32.mrb[0].mxu0
        %715 = vmatprep.mubr.f32.mxu0 0.0
        %716 = vmatmul.mubr.f32.gmra.mrb[0].mxu0 %v576
        %v717 = vpop.f32.mrb[0].mxu0
        %v718 = vadd.f32 %v530, %v717
        %v719 = vpop.f32.mrb[0].mxu0
        %720 = vmatprep.mubr.f32.mxu0 0.0
        %721 = vmatmul.mubr.f32.gmra.mrb[0].mxu0 %v579
        %v722 = vpop.f32.mrb[0].mxu0
        %v723 = vadd.f32 %v530, %v722
        %v724 = vpop.f32.mrb[0].mxu0
        %725 = vdwg.mxu0
        %v726 = vmax.f32 %v648, 0.0
        %v727 = vmax.f32 %v653, 0.0
        %v728 = vmax.f32 %v658, 0.0
        %v729 = vmax.f32 %v663, 0.0
        %v730 = vmax.f32 %v668, 0.0
        %v731 = vmax.f32 %v673, 0.0
        %v732 = vmax.f32 %v678, 0.0
        %v733 = vmax.f32 %v683, 0.0
        %v734 = vmax.f32 %v688, 0.0
        %v735 = vmax.f32 %v693, 0.0
        %v736 = vmax.f32 %v698, 0.0
        %v737 = vmax.f32 %v703, 0.0
        %v738 = vmax.f32 %v708, 0.0
        %v739 = vmax.f32 %v713, 0.0
        %v740 = vmax.f32 %v718, 0.0
        %v741 = vmax.f32 %v723, 0.0
        %v742 = vld [vmem:[%s5] sm:$0x1]
        %v743 = vld [vmem:[#allocation2] sm:$0x1]
        %745 = vset.pattern.permute.xlu0 0
        %746 = vperm.xlu0 %745, %v743
        %v747 = vpop.permute.xlu0 %746
        %v749 = vlaneseq
        %v750 = vshrl.u32 %v749, 7
        %v751 = vsub.s32 0, %v750
        %v752 = vrot.slane %v747, %v751
        %v754 = vsel %vm307, %v742, 0
        %v757 = vsel %vm307, %v726, 0
        %v760 = vsel %vm307, %v727, 0
        %v763 = vsel %vm307, %v728, 0
        %v766 = vsel %vm307, %v729, 0
        %v769 = vsel %vm307, %v730, 0
        %v772 = vsel %vm307, %v731, 0
        %v775 = vsel %vm307, %v732, 0
        %v778 = vsel %vm307, %v733, 0
        %v781 = vsel %vm307, %v734, 0
        %v784 = vsel %vm307, %v735, 0
        %v787 = vsel %vm307, %v736, 0
        %v790 = vsel %vm307, %v737, 0
        %v793 = vsel %vm307, %v738, 0
        %v796 = vsel %vm307, %v739, 0
        %v799 = vsel %vm307, %v740, 0
        %v802 = vsel %vm307, %v741, 0
        %804 = vmatprep.subr.mxu0 0.0
        %805 = vmatpush1.xpose.msra.mxu0 %v757
        %806 = vmatprep.subr.mxu0 0.0
        %807 = vmatpush1.xpose.msra.mxu0 %v760
        %808 = vmatprep.subr.mxu0 0.0
        %809 = vmatpush1.xpose.msra.mxu0 %v763
        %810 = vmatprep.subr.mxu0 0.0
        %811 = vmatpush1.xpose.msra.mxu0 %v766
        %812 = vmatprep.subr.mxu0 0.0
        %813 = vmatpush1.xpose.msra.mxu0 %v769
        %814 = vmatprep.subr.mxu0 0.0
        %815 = vmatpush1.xpose.msra.mxu0 %v772
        %816 = vmatprep.subr.mxu0 0.0
        %817 = vmatpush1.xpose.msra.mxu0 %v775
        %818 = vmatprep.subr.mxu0 0.0
        %819 = vmatpush1.xpose.msra.mxu0 %v778
        %820 = vmatprep.subr.mxu0 0.0
        %821 = vmatpush1.xpose.msra.mxu0 %v781
        %822 = vmatprep.subr.mxu0 0.0
        %823 = vmatpush1.xpose.msra.mxu0 %v784
        %824 = vmatprep.subr.mxu0 0.0
        %825 = vmatpush1.xpose.msra.mxu0 %v787
        %826 = vmatprep.subr.mxu0 0.0
        %827 = vmatpush1.xpose.msra.mxu0 %v790
        %828 = vmatprep.subr.mxu0 0.0
        %829 = vmatpush1.xpose.msra.mxu0 %v793
        %830 = vmatprep.subr.mxu0 0.0
        %831 = vmatpush1.xpose.msra.mxu0 %v796
        %832 = vmatprep.subr.mxu0 0.0
        %833 = vmatpush1.xpose.msra.mxu0 %v799
        %834 = vmatprep.subr.mxu0 0.0
        %835 = vmatpush1.xpose.msra.mxu0 %v802
        %836 = vmatprep.subr.mxu0 0.0
        %837 = vmatpush1.xpose.msra.mxu0 0.0
        %838 = vmatprep.subr.mxu0 0.0
        %839 = vmatpush1.xpose.msra.mxu0 0.0
        %840 = vmatprep.subr.mxu0 0.0
        %841 = vmatpush1.xpose.msra.mxu0 0.0
        %842 = vmatprep.subr.mxu0 0.0
        %843 = vmatpush1.xpose.msra.mxu0 0.0
        %844 = vmatprep.subr.mxu0 0.0
        %845 = vmatpush1.xpose.msra.mxu0 0.0
        %846 = vmatprep.subr.mxu0 0.0
        %847 = vmatpush1.xpose.msra.mxu0 0.0
        %848 = vmatprep.subr.mxu0 0.0
        %849 = vmatpush1.xpose.msra.mxu0 0.0
        %850 = vmatprep.subr.mxu0 0.0
        %851 = vmatpush1.xpose.msra.mxu0 0.0
        %852 = vmatprep.subr.mxu0 0.0
        %853 = vmatpush1.xpose.msra.mxu0 0.0
        %854 = vmatprep.subr.mxu0 0.0
        %855 = vmatpush1.xpose.msra.mxu0 0.0
        %856 = vmatprep.subr.mxu0 0.0
        %857 = vmatpush1.xpose.msra.mxu0 0.0
        %858 = vmatprep.subr.mxu0 0.0
        %859 = vmatpush1.xpose.msra.mxu0 0.0
        %860 = vmatprep.subr.mxu0 0.0
        %861 = vmatpush1.xpose.msra.mxu0 0.0
        %862 = vmatprep.subr.mxu0 0.0
        %863 = vmatpush1.xpose.msra.mxu0 0.0
        %864 = vmatprep.subr.mxu0 0.0
        %865 = vmatpush1.xpose.msra.mxu0 0.0
        %866 = vmatprep.subr.mxu0 0.0
        %867 = vmatpush1.xpose.msra.mxu0 0.0
        %868 = vmatprep.mubr.f32.mxu0 0.0
        %869 = vmatmul.mubr.f32.gmra.mrb[0].mxu0 %v754
        %v870 = vpop.f32.mrb[0].mxu0
        %v871 = vadd.f32 %v752, %v870
        %v872 = vpop.f32.mrb[0].mxu0
        %873 = vdwg.mxu0
        %874 = vst [vmem:[%s273] sm:$0x1] %v871
        %s875 = sand.u32 %s183, 1
        %s876 = scalar_lea.sflag [#allocation4], %s875
        %s877 = sand.u32 %s183, 1
        %s878 = scalar_lea.vmem [#allocation3], %s877
        // Predicated region
        $region49: #{adapter_forward.1} parent=47 // pred_check
          %p879 = pneg %p193
        $region50: #{adapter_forward.1} parent=47 // pred_check_branch
          %881 = sbr.rel (%p879) target = $region52
        $region51: #{adapter_forward.1} parent=47 // pred_region
          %s883 = ssub.s32 16, 16
          %884 = vsyncadd %s876, %s883
          %s885 = smul.addr %s23, 16
          %s886 = scalar_lea.hbm %s7, %s885
          %s888 = sshll.u32 %s878, 4
          %s889 = int_to_ptr.vmem [resolvable:$true] %s888
          %891 = dma.vmem_to_hbm [thread:$0]  %s889, 16, %s886, %s876
        $region52: #{adapter_forward.1} parent=47 // pred_fallthru
          _
      $region48: #{adapter_forward.1} parent=5 // pred_fallthru
        _
      %p892 = scmp.le.s32.totalorder 2, %s18
      // Predicated region
      $region53: #{adapter_forward.1} parent=5 // pred_check
        %p893 = pneg %p892
      $region54: #{adapter_forward.1} parent=5 // pred_check_branch
        %895 = sbr.rel (%p893) target = $region56
      $region55: #{adapter_forward.1} parent=5 // pred_region
        %s896 = ssub.s32 %s18, 2
        // Predicated region
        $region57: #{adapter_forward.1} parent=55 // pred_check
          %p897 = pneg %p199
        $region58: #{adapter_forward.1} parent=55 // pred_check_branch
          %899 = sbr.rel (%p897) target = $region60
        $region59: #{adapter_forward.1} parent=55 // pred_region
          %s900 = sand.u32 %s184, 1
          %s901 = scalar_lea.sflag [#allocation4], %s900
          %s902 = sand.u32 %s184, 1
          %s903 = scalar_lea.vmem [#allocation3], %s902
          %904 = dma.done %s901, 16
        $region60: #{adapter_forward.1} parent=55 // pred_fallthru
          _
      $region56: #{adapter_forward.1} parent=5 // pred_fallthru
        _
    $region6: #{adapter_forward.1} parent=1 // loop_footer
      %s22 = sadd.s32 1, %s18
    $region7: #{adapter_forward.1} parent=1 // loop_footer_branch
      %17 = sbr.rel target = $region3
    $region8: #{adapter_forward.1} parent=1 // loop_exit
      _
    %905 = vsyncpa [#allocation4], 1
    %s906 = scalar_lea.sflag [#allocation4], 1
    %907 = vsyncpa %s906, 1

</llo_original>
